<compile_context>
chip_gen: v7x
topology: tpu7x:2x2x1
jax: 0.10.0
libtpu: 0.0.40
codegen_flags: <defaults>
</compile_context>

<pallas_src>
import jax
import jax.numpy as jnp
from jax.experimental import pallas as pl
from jax.experimental.pallas import tpu as pltpu

_LANES = 128


def _quant_kernel(x_ref, o_ref):
    # Compute in f32 regardless of storage dtype (v5e has no bf16 VPU/EUP).
    # TODO(synk): torch.round/clamp on a bf16 tensor runs in bf16; f32 compute here
    # is bit-exact only for f32 inputs (and at least as accurate for narrower ones).
    x = x_ref[...].astype(jnp.float32)
    x = jnp.clip(x, 0.0, 1.0)
    # jnp.round matches torch.round (half-to-even); literal /255.0 for bit parity.
    o_ref[...] = (jnp.round(x * 255.0) / 255.0).astype(o_ref.dtype)


def _quant_ref(x: jax.Array) -> jax.Array:
    """Plain-jnp reference / fallback path (XLA fuses this into one HBM pass)."""
    xf = jnp.clip(x.astype(jnp.float32), 0.0, 1.0)
    return (jnp.round(xf * 255.0) / 255.0).astype(x.dtype)


def quantization(x: jax.Array, *, block_rows: int | None = None,
                 min_pallas_bytes: int = 1 << 20) -> jax.Array:
    """Forward of the PyTorch `Quantization` module: clamp(x,0,1) quantized to 1/255 steps."""
    orig_shape = x.shape
    orig_dtype = x.dtype
    total = x.size
    itemsize = jnp.dtype(orig_dtype).itemsize

    # Small-tensor fast path: fixed pallas_call launch + single-step pipeline
    # prologue would dominate; XLA does the whole chain in one fused pass.
    if total * itemsize < min_pallas_bytes:
        return _quant_ref(x)

    flat = jnp.ravel(x)
    rem = total % _LANES
    aligned = total - rem
    if aligned == 0:
        return _quant_ref(x)

    # Lane-dense slab. Widen to 1024 lanes when it is free (fewer rows, less
    # addressing work); otherwise exactly 128 (already unmasked stores).
    width = 1024 if aligned % 1024 == 0 else _LANES
    rows = aligned // width
    # Zero-copy reshape when rem == 0; otherwise a cheap prefix slice.
    slab = flat[:aligned].reshape(rows, width)

    # Sublane packing multiple: 8 for 32-bit, 16 for 16-bit, 32 for 8-bit dtypes.
    sublane_mult = max(8, 32 // itemsize)

    if block_rows is None:
        # ~4 MiB per buffer on v6e/v7x (double-buffered in+out = 16 MiB, inside the
        # 32 MiB scoped default).  Cap at 2 MiB on v5e (16 MiB scoped default),
        # which already reaches >=85% of its ~0.82 TB/s roofline.
        kind = ""
        try:
            kind = jax.devices()[0].device_kind.lower()
        except Exception:  # pragma: no cover - defensive; keeps tracing portable
            pass
        is_v5e = ("v5e" in kind) or ("v5 lite" in kind) or ("v5litepod" in kind)
        target_bytes = (2 << 20) if is_v5e else (4 << 20)
        block_rows = max(sublane_mult, target_bytes // (width * itemsize))

    # Keep at least ~8 grid steps when the tensor allows it: gives the DMA
    # pipeline depth and lets v7x's megacore "parallel" axis split across both TCs.
    br = min(block_rows, rows, max(sublane_mult, pl.cdiv(rows, 8)))
    if br < rows:
        # Blocks that don't span the full dim must be a sublane-packing multiple.
        br = max(sublane_mult, (br // sublane_mult) * sublane_mult)
    br = min(br, rows)
    grid = (pl.cdiv(rows, br),)

    out = pl.pallas_call(
        _quant_kernel,
        out_shape=jax.ShapeDtypeStruct((rows, width), orig_dtype),
        grid_spec=pltpu.PrefetchScalarGridSpec(
            num_scalar_prefetch=0,
            grid=grid,
            in_specs=[pl.BlockSpec((br, width), lambda i: (i, 0))],
            out_specs=pl.BlockSpec((br, width), lambda i: (i, 0)),
        ),
        compiler_params=pltpu.CompilerParams(
            # "parallel" is load-bearing on v7x: shards the row grid across both
            # TensorCores so two HBM streams are in flight.
            dimension_semantics=("parallel",),
        ),
    )(slab)

    out_flat = out.reshape(aligned)
    if rem != 0:
        # <=127-element tail handled by plain jnp; avoids padding/copying the
        # whole tensor just for the ragged remainder.
        tail = _quant_ref(flat[aligned:])
        out_flat = jnp.concatenate([out_flat, tail])
    return out_flat.reshape(orig_shape)


if __name__ == "__main__":
    key = jax.random.PRNGKey(0)

    # NCHW input consistent with the module; values outside [0,1] exercise the clamp.
    x = jax.random.uniform(key, (2, 4, 16, 16), dtype=jnp.float32,
                           minval=-0.5, maxval=1.5)
    ref = jnp.round(jnp.clip(x, 0.0, 1.0) * 255.0) / 255.0

    # Default path: tiny tensor -> fused XLA fast path.
    y = jax.block_until_ready(quantization(x))
    assert jnp.allclose(y, ref, atol=1e-6), "mismatch vs reference (fast path)"

    # Force the Pallas kernel on the same input (lane-aligned case).
    y_p = jax.block_until_ready(quantization(x, min_pallas_bytes=0))
    assert jnp.allclose(y_p, ref, atol=1e-6), "mismatch vs reference (pallas aligned)"

    # Ragged case through the Pallas path: total elements not a multiple of 128.
    x2 = jax.random.uniform(jax.random.PRNGKey(1), (3, 5, 67), dtype=jnp.float32,
                            minval=-0.5, maxval=1.5)
    ref2 = jnp.round(jnp.clip(x2, 0.0, 1.0) * 255.0) / 255.0
    y2 = jax.block_until_ready(quantization(x2, min_pallas_bytes=0))
    assert jnp.allclose(y2, ref2, atol=1e-6), "mismatch vs reference (pallas ragged)"

    print("KERNEL_OK")
</pallas_src>

<mosaic_0001>
module attributes {stable_mosaic.version = 11 : i64} {
  func.func @_quant_kernel(%arg0: i32, %arg1: memref<2x1024xf32, #tpu.memory_space<vmem>>, %arg2: memref<2x1024xf32, #tpu.memory_space<vmem>>) attributes {dimension_semantics = [#tpu.dimension_semantics<parallel>], iteration_bounds = array<i64: 1>, scalar_prefetch = 0 : i64, scratch_operands = 0 : i64, tpu.core_type = #tpu.core_type<tc>, window_params = [{transform_indices = @transform_0, window_bounds = array<i64: 2, 1024>}, {transform_indices = @transform_1, window_bounds = array<i64: 2, 1024>}]} {
    %c0 = arith.constant 0 : index
    %c0_0 = arith.constant 0 : index
    %0 = vector.load %arg1[%c0, %c0_0] : memref<2x1024xf32, #tpu.memory_space<vmem>>, vector<2x1024xf32>
    %cst = arith.constant 0.000000e+00 : f32
    %cst_1 = arith.constant 1.000000e+00 : f32
    %1 = vector.broadcast %cst : f32 to vector<2x1024xf32>
    %2 = arith.maximumf %1, %0 : vector<2x1024xf32>
    %3 = vector.broadcast %cst_1 : f32 to vector<2x1024xf32>
    %4 = arith.minimumf %3, %2 : vector<2x1024xf32>
    %cst_2 = arith.constant 2.550000e+02 : f32
    %5 = vector.broadcast %cst_2 : f32 to vector<2x1024xf32>
    %6 = arith.mulf %4, %5 : vector<2x1024xf32>
    %7 = math.roundeven %6 : vector<2x1024xf32>
    %cst_3 = arith.constant 2.550000e+02 : f32
    %8 = vector.broadcast %cst_3 : f32 to vector<2x1024xf32>
    %9 = arith.divf %7, %8 : vector<2x1024xf32>
    %c0_4 = arith.constant 0 : index
    %c0_5 = arith.constant 0 : index
    %10 = vector.load %arg2[%c0_4, %c0_5] : memref<2x1024xf32, #tpu.memory_space<vmem>>, vector<2x1024xf32>
    tpu.vector_store %arg2[%c0_4, %c0_5], %9 {strides = array<i32>} : memref<2x1024xf32, #tpu.memory_space<vmem>>, vector<2x1024xf32>,
    return
  }
  func.func @transform_0(%arg0: i32) -> (i32, i32) {
    %c0_i32 = arith.constant 0 : i32
    %c0_i32_0 = arith.constant 0 : i32
    return %arg0, %c0_i32 : i32, i32
  }
  func.func @transform_1(%arg0: i32) -> (i32, i32) {
    %c0_i32 = arith.constant 0 : i32
    %c0_i32_0 = arith.constant 0 : i32
    return %arg0, %c0_i32 : i32, i32
  }
}

</mosaic_0001>

<llo_original>
// kernel: tpu_custom_call.1
$region0: #{tpu_custom_call.1}
  #allocation0 [shape = 'u32[]', space=smem, size = 0x4, offset = 0x4, fixed_abs, tag = 'smem constant byte address 0x4 - core index']
  #allocation1 [shape = 'u32[144,128]{1,0:T(1,128)}', space=vmem, size = 0x12000, scoped, tag = 'internal scratch']
  %s0 = inlined_call_operand.hbm [shape: f32[2,1024], index: 0, kind: input, shape index: {}]
  %s1 = inlined_call_operand.hbm [shape: f32[2,1024], index: 1, kind: output, shape index: {}]
  %s2 = sld [smem:[#allocation0]]
  $region18: #{tpu_custom_call.1} parent=0
    _
  %s4 = ssub.s32 1, %s2
  %s5 = scalar_select 0, %s4, %s2
  $region1: #{tpu_custom_call.1} parent=0
    #allocation2 [shape = 'u8[8192]{0}', space=vmem, size = 0x2000, scoped, tag = 'input window, operand 0, single buffered']
    #allocation3 [shape = 's32[1]{0}', space=sflag, size = 0x4, scoped, tag = 'scoped memory for tpu_custom_call.1']
    #allocation4 [shape = 's32[1]{0}', space=sflag, size = 0x4, scoped, tag = 'scoped memory for tpu_custom_call.1']
    #allocation5 [shape = 'u8[8192]{0}', space=vmem, size = 0x2000, scoped, tag = 'output window, operand 0, single buffered']
    %6 = vsyncpa [#allocation3], 0
    %7 = vsyncpa [#allocation4], 0
    // Predicated region
    $region2: #{tpu_custom_call.1} parent=1 // pred_check
      _
    $region3: #{tpu_custom_call.1} parent=1 // pred_check_branch
      %9 = sbr.rel (0) target = $region5
    $region4: #{tpu_custom_call.1} parent=1 // pred_region
      %s11 = ssub.s32 256, 256
      %12 = vsyncadd [#allocation3], %s11
      %s14 = sshll.u32 [#allocation2], 4
      %s15 = int_to_ptr.vmem [resolvable:$true] %s14
      %17 = dma.hbm_to_vmem [thread:$0]  %s0, 256, %s15, [#allocation3]
    $region5: #{tpu_custom_call.1} parent=1 // pred_fallthru
      _
    // Predicated region
    $region6: #{tpu_custom_call.1} parent=1 // pred_check
      _
    $region7: #{tpu_custom_call.1} parent=1 // pred_check_branch
      %19 = sbr.rel (0) target = $region9
    $region8: #{tpu_custom_call.1} parent=1 // pred_region
      %20 = dma.done [#allocation3], 256
    $region9: #{tpu_custom_call.1} parent=1 // pred_fallthru
      _
    %v21 = vld [vmem:[#allocation2] sm:$0xff]
    %v22 = vld [vmem:[#allocation2 + $0x8] sm:$0xff]
    %v23 = vmax.f32 %v21, 0.0
    %v24 = vmax.f32 %v22, 0.0
    %v25 = vmin.f32 %v23, 1.0
    %v26 = vmin.f32 %v24, 1.0
    %v27 = vmul.f32 %v25, 255.0
    %v28 = vmul.f32 %v26, 255.0
    %v29 = vround.ne.pseudo %v27
    %v30 = vround.ne.pseudo %v28
    %v31 = vrcp.pop 255.0
    %v32 = vmul.f32 %v29, %v31
    %v33 = vmul.f32 %v30, %v31
    %34 = vst [vmem:[#allocation5] sm:$0xff] %v32
    %35 = vst [vmem:[#allocation5 + $0x8] sm:$0xff] %v33
    // Predicated region
    $region10: #{tpu_custom_call.1} parent=1 // pred_check
      _
    $region11: #{tpu_custom_call.1} parent=1 // pred_check_branch
      %37 = sbr.rel (0) target = $region13
    $region12: #{tpu_custom_call.1} parent=1 // pred_region
      %s39 = ssub.s32 256, 256
      %40 = vsyncadd [#allocation4], %s39
      %s42 = sshll.u32 [#allocation5], 4
      %s43 = int_to_ptr.vmem [resolvable:$true] %s42
      %45 = dma.vmem_to_hbm [thread:$0]  %s43, 256, %s1, [#allocation4]
    $region13: #{tpu_custom_call.1} parent=1 // pred_fallthru
      _
    // Predicated region
    $region14: #{tpu_custom_call.1} parent=1 // pred_check
      _
    $region15: #{tpu_custom_call.1} parent=1 // pred_check_branch
      %47 = sbr.rel (0) target = $region17
    $region16: #{tpu_custom_call.1} parent=1 // pred_region
      %48 = dma.done [#allocation4], 256
    $region17: #{tpu_custom_call.1} parent=1 // pred_fallthru
      _
    %49 = vsyncpa [#allocation3], 1
    %50 = vsyncpa [#allocation4], 1

</llo_original>
